<compile_context>
chip_gen: v5e
topology: v5e:2x2
jax: 0.10.0
libtpu: 0.0.40
codegen_flags: <defaults>
</compile_context>

<pallas_src>
import functools

import jax
import jax.numpy as jnp
from jax import lax
from jax.experimental import pallas as pl
from jax.experimental.pallas import tpu as pltpu


def _basic_block_kernel(x_ref, w1_ref, b1_ref, w2_ref, s2_ref, b2_ref,
                        o_ref, pad_ref, cols_ref, *, width):
    # x_ref    : (1, C, HW)         one image, spatial flattened on lanes
    # w1_ref   : (C, 9*C)           bn1 scale folded in
    # b1_ref   : (C, 1)             bn1 shift
    # w2_ref   : (C, 9*C)
    # s2_ref   : (C, 1)             bn2 scale (applied AFTER the residual add)
    # b2_ref   : (C, 1)             bn2 shift
    # o_ref    : (1, C, HW)
    # pad_ref  : (C, HW + 2*pad)    zero-padded flat image scratch (shared)
    # cols_ref : (9*C, HW)          im2col scratch (shared by both convs)
    hw = x_ref.shape[2]
    c = x_ref.shape[1]
    pad = (pad_ref.shape[1] - hw) // 2

    # Zero the padded scratch once per grid step; both convs only overwrite the
    # centre window, so the halo stays zero for conv2 as well.
    pad_ref[...] = jnp.zeros_like(pad_ref)

    # Column-wrap masks, computed once and reused by both im2col passes.
    col = jax.lax.broadcasted_iota(jnp.int32, (1, hw), 1) % width
    not_last = col < (width - 1)    # valid source column for dw = +1
    not_first = col > 0             # valid source column for dw = -1

    def im2col():
        """Write the (9*C, HW) im2col matrix built from the padded flat image."""
        t = 0
        for dh in (-1, 0, 1):
            for dw in (-1, 0, 1):
                start = pad + dh * width + dw           # static offset
                tap = pad_ref[:, pl.ds(start, hw)]      # (C, HW)
                if dw == 1:
                    tap = jnp.where(not_last, tap, 0.0)
                elif dw == -1:
                    tap = jnp.where(not_first, tap, 0.0)
                cols_ref[pl.ds(t * c, c), :] = tap
                t += 1

    x = x_ref[0].astype(jnp.float32)                    # (C, HW)

    # ---- conv1 + bn1 + relu  (bn1 scale pre-folded into w1) ----
    pad_ref[:, pl.ds(pad, hw)] = x                      # lane-aligned centre store
    im2col()
    h = jnp.dot(w1_ref[...], cols_ref[...],
                preferred_element_type=jnp.float32)     # (C, HW)
    h = jnp.maximum(h + b1_ref[...], 0.0)

    # ---- conv2 + identity residual + bn2 + relu ----
    pad_ref[:, pl.ds(pad, hw)] = h
    im2col()
    acc = jnp.dot(w2_ref[...], cols_ref[...],
                  preferred_element_type=jnp.float32)   # (C, HW)
    acc = acc + x                                       # out += x
    y = jnp.maximum(acc * s2_ref[...] + b2_ref[...], 0.0)   # bn2 AFTER the add
    o_ref[0] = y.astype(o_ref.dtype)


def _fold_bn(gamma, beta, mean, var, eps=1e-5):
    scale = gamma * jax.lax.rsqrt(var + eps)
    shift = beta - mean * scale
    return scale, shift


@jax.jit
def basic_block_forward(x_nchw, params):
    """x_nchw: (N, C, H, W), like the PyTorch module (stride=1, no downsample)."""
    N, C, H, W = x_nchw.shape
    HW = H * W
    Cout = params["w1"].shape[0]
    assert Cout == C, "identity residual requires in_planes == planes"

    s1, t1 = _fold_bn(params["g1"], params["beta1"], params["m1"], params["v1"])
    s2, t2 = _fold_bn(params["g2"], params["beta2"], params["m2"], params["v2"])

    # (Cout, Cin, kh, kw) -> (Cout, kh, kw, Cin) -> (Cout, 9*Cin); fold bn1 scale.
    w1mat = jnp.transpose(params["w1"], (0, 2, 3, 1)).reshape(Cout, 9 * C) * s1[:, None]
    w2mat = jnp.transpose(params["w2"], (0, 2, 3, 1)).reshape(Cout, 9 * Cout)

    # Zero halo on each side of the flat spatial axis; >= W+1 lanes, 128-aligned
    # so the centre store stays lane-aligned.
    pad = 128 * ((W + 1 + 127) // 128)
    x_flat = x_nchw.reshape(N, C, HW)          # contiguous reshape, no transpose

    kernel = functools.partial(_basic_block_kernel, width=W)
    out_flat = pl.pallas_call(
        kernel,
        out_shape=jax.ShapeDtypeStruct((N, Cout, HW), x_nchw.dtype),
        grid_spec=pltpu.PrefetchScalarGridSpec(
            num_scalar_prefetch=0,
            grid=(N,),
            in_specs=[
                pl.BlockSpec((1, C, HW), lambda n: (n, 0, 0)),
                pl.BlockSpec((Cout, 9 * C), lambda n: (0, 0)),
                pl.BlockSpec((Cout, 1), lambda n: (0, 0)),
                pl.BlockSpec((Cout, 9 * Cout), lambda n: (0, 0)),
                pl.BlockSpec((Cout, 1), lambda n: (0, 0)),
                pl.BlockSpec((Cout, 1), lambda n: (0, 0)),
            ],
            out_specs=pl.BlockSpec((1, Cout, HW), lambda n: (n, 0, 0)),
            scratch_shapes=[
                pltpu.VMEM((C, HW + 2 * pad), jnp.float32),   # shared pad scratch
                pltpu.VMEM((9 * C, HW), jnp.float32),         # im2col scratch
            ],
        ),
        compiler_params=pltpu.CompilerParams(
            dimension_semantics=("parallel",)),
    )(x_flat, w1mat, t1[:, None], w2mat, s2[:, None], t2[:, None])

    return out_flat.reshape(N, Cout, H, W)


def _reference(x_nchw, params):
    """Plain-JAX reference (lax conv, NCHW) for a correctness check."""
    dn = ("NCHW", "OIHW", "NCHW")
    s1, t1 = _fold_bn(params["g1"], params["beta1"], params["m1"], params["v1"])
    s2, t2 = _fold_bn(params["g2"], params["beta2"], params["m2"], params["v2"])
    h = lax.conv_general_dilated(x_nchw, params["w1"], (1, 1), "SAME",
                                 dimension_numbers=dn,
                                 precision=lax.Precision.HIGHEST)
    h = jnp.maximum(h * s1[None, :, None, None] + t1[None, :, None, None], 0.0)
    o = lax.conv_general_dilated(h, params["w2"], (1, 1), "SAME",
                                 dimension_numbers=dn,
                                 precision=lax.Precision.HIGHEST)
    o = o + x_nchw
    o = jnp.maximum(o * s2[None, :, None, None] + t2[None, :, None, None], 0.0)
    return o


def init_params(key, in_planes, planes):
    ks = jax.random.split(key, 8)
    return {
        # PyTorch conv weight layout: (Cout, Cin, kh, kw), bias=False.
        "w1": jax.random.normal(ks[0], (planes, in_planes, 3, 3), jnp.float32) * 0.1,
        "w2": jax.random.normal(ks[1], (planes, planes, 3, 3), jnp.float32) * 0.1,
        "g1": 1.0 + 0.1 * jax.random.normal(ks[2], (planes,), jnp.float32),
        "beta1": 0.1 * jax.random.normal(ks[3], (planes,), jnp.float32),
        "m1": 0.1 * jax.random.normal(ks[4], (planes,), jnp.float32),
        "v1": 0.5 + jax.random.uniform(ks[5], (planes,), jnp.float32),
        "g2": 1.0 + 0.1 * jax.random.normal(ks[6], (planes,), jnp.float32),
        "beta2": 0.1 * jax.random.normal(ks[7], (planes,), jnp.float32),
        "m2": jnp.zeros((planes,), jnp.float32),
        "v2": jnp.ones((planes,), jnp.float32),
    }


if __name__ == "__main__":
    key = jax.random.PRNGKey(0)
    k_x, k_p = jax.random.split(key)

    N, C, H, W = 2, 4, 16, 16          # in_planes = planes = 4, stride = 1
    x = jax.random.normal(k_x, (N, C, H, W), jnp.float32)
    params = init_params(k_p, in_planes=C, planes=C)

    out = jax.block_until_ready(basic_block_forward(x, params))
    ref = _reference(x, params)

    assert out.shape == (N, C, H, W)
    assert jnp.allclose(out, ref, atol=1e-3, rtol=1e-3), "mismatch vs reference"
    print("KERNEL_OK")
</pallas_src>

<mosaic_0001>
module attributes {stable_mosaic.version = 11 : i64} {
  func.func @_basic_block_kernel(%arg0: i32, %arg1: memref<1x4x256xf32, #tpu.memory_space<vmem>>, %arg2: memref<4x36xf32, #tpu.memory_space<vmem>>, %arg3: memref<4x1xf32, #tpu.memory_space<vmem>>, %arg4: memref<4x36xf32, #tpu.memory_space<vmem>>, %arg5: memref<4x1xf32, #tpu.memory_space<vmem>>, %arg6: memref<4x1xf32, #tpu.memory_space<vmem>>, %arg7: memref<1x4x256xf32, #tpu.memory_space<vmem>>, %arg8: memref<4x512xf32, #tpu.memory_space<vmem>>, %arg9: memref<36x256xf32, #tpu.memory_space<vmem>>) attributes {dimension_semantics = [#tpu.dimension_semantics<parallel>], iteration_bounds = array<i64: 2>, scalar_prefetch = 0 : i64, scratch_operands = 2 : i64, tpu.core_type = #tpu.core_type<tc>, window_params = [{transform_indices = @transform_0, window_bounds = array<i64: 1, 4, 256>}, {pipeline_mode = #tpu.pipeline_mode<synchronous>, transform_indices = @transform_1, window_bounds = array<i64: 4, 36>}, {pipeline_mode = #tpu.pipeline_mode<synchronous>, transform_indices = @transform_2, window_bounds = array<i64: 4, 1>}, {pipeline_mode = #tpu.pipeline_mode<synchronous>, transform_indices = @transform_3, window_bounds = array<i64: 4, 36>}, {pipeline_mode = #tpu.pipeline_mode<synchronous>, transform_indices = @transform_4, window_bounds = array<i64: 4, 1>}, {pipeline_mode = #tpu.pipeline_mode<synchronous>, transform_indices = @transform_5, window_bounds = array<i64: 4, 1>}, {transform_indices = @transform_6, window_bounds = array<i64: 1, 4, 256>}]} {
    %cst = arith.constant 0.000000e+00 : f32
    %0 = vector.broadcast %cst : f32 to vector<4x512xf32>
    %c0 = arith.constant 0 : index
    %c0_0 = arith.constant 0 : index
    %1 = vector.load %arg8[%c0, %c0_0] : memref<4x512xf32, #tpu.memory_space<vmem>>, vector<4x512xf32>
    tpu.vector_store %arg8[%c0, %c0_0], %0 {strides = array<i32>} : memref<4x512xf32, #tpu.memory_space<vmem>>, vector<4x512xf32>,
    %2 = tpu.iota {dimensions = array<i32: 1>} : vector<1x256xi32>
    %c16_i32 = arith.constant 16 : i32
    %c0_i32 = arith.constant 0 : i32
    %3 = arith.cmpi eq, %c16_i32, %c0_i32 : i32
    %c1_i32 = arith.constant 1 : i32
    %4 = arith.select %3, %c1_i32, %c16_i32 : i32
    %5 = vector.broadcast %4 : i32 to vector<1x256xi32>
    %6 = arith.remsi %2, %5 : vector<1x256xi32>
    %c0_i32_1 = arith.constant 0 : i32
    %7 = vector.broadcast %c0_i32_1 : i32 to vector<1x256xi32>
    %8 = arith.cmpi ne, %6, %7 : vector<1x256xi32>
    %c0_i32_2 = arith.constant 0 : i32
    %9 = vector.broadcast %c0_i32_2 : i32 to vector<1x256xi32>
    %10 = arith.cmpi slt, %6, %9 : vector<1x256xi32>
    %c0_i32_3 = arith.constant 0 : i32
    %11 = arith.cmpi slt, %4, %c0_i32_3 : i32
    %12 = vector.broadcast %11 : i1 to vector<1x256xi1>
    %13 = vector.broadcast %12 : vector<1x256xi1> to vector<1x256xi1>
    %14 = arith.xori %10, %13 : vector<1x256xi1>
    %15 = arith.andi %14, %8 : vector<1x256xi1>
    %16 = vector.broadcast %4 : i32 to vector<1x256xi32>
    %17 = arith.addi %6, %16 : vector<1x256xi32>
    %18 = arith.select %15, %17, %6 : vector<1x256xi1>, vector<1x256xi32>
    %c15_i32 = arith.constant 15 : i32
    %19 = vector.broadcast %c15_i32 : i32 to vector<1x256xi32>
    %20 = arith.cmpi slt, %18, %19 : vector<1x256xi32>
    %c0_i32_4 = arith.constant 0 : i32
    %21 = vector.broadcast %c0_i32_4 : i32 to vector<1x256xi32>
    %22 = arith.cmpi sgt, %18, %21 : vector<1x256xi32>
    %c0_5 = arith.constant 0 : index
    %c0_6 = arith.constant 0 : index
    %c0_7 = arith.constant 0 : index
    %23 = vector.load %arg1[%c0_5, %c0_6, %c0_7] : memref<1x4x256xf32, #tpu.memory_space<vmem>>, vector<1x4x256xf32>
    %24 = vector.shape_cast %23 : vector<1x4x256xf32> to vector<4x256xf32>
    %c0_8 = arith.constant 0 : index
    %c128 = arith.constant 128 : index
    %25 = vector.load %arg8[%c0_8, %c128] : memref<4x512xf32, #tpu.memory_space<vmem>>, vector<4x256xf32>
    tpu.vector_store %arg8[%c0_8, %c128], %24 {strides = array<i32>} : memref<4x512xf32, #tpu.memory_space<vmem>>, vector<4x256xf32>,
    %c0_9 = arith.constant 0 : index
    %c111 = arith.constant 111 : index
    %26 = vector.load %arg8[%c0_9, %c111] : memref<4x512xf32, #tpu.memory_space<vmem>>, vector<4x256xf32>
    %cst_10 = arith.constant 0.000000e+00 : f32
    %27 = vector.shape_cast %22 : vector<1x256xi1> to vector<1x256xi1>
    %28 = vector.broadcast %27 : vector<1x256xi1> to vector<4x256xi1>
    %29 = vector.broadcast %cst_10 : f32 to vector<4x256xf32>
    %30 = arith.select %28, %26, %29 : vector<4x256xi1>, vector<4x256xf32>
    %c0_11 = arith.constant 0 : index
    %c0_12 = arith.constant 0 : index
    %31 = vector.load %arg9[%c0_11, %c0_12] : memref<36x256xf32, #tpu.memory_space<vmem>>, vector<4x256xf32>
    tpu.vector_store %arg9[%c0_11, %c0_12], %30 {strides = array<i32>} : memref<36x256xf32, #tpu.memory_space<vmem>>, vector<4x256xf32>,
    %c0_13 = arith.constant 0 : index
    %c112 = arith.constant 112 : index
    %32 = vector.load %arg8[%c0_13, %c112] : memref<4x512xf32, #tpu.memory_space<vmem>>, vector<4x256xf32>
    %c4 = arith.constant 4 : index
    %c0_14 = arith.constant 0 : index
    %33 = vector.load %arg9[%c4, %c0_14] : memref<36x256xf32, #tpu.memory_space<vmem>>, vector<4x256xf32>
    tpu.vector_store %arg9[%c4, %c0_14], %32 {strides = array<i32>} : memref<36x256xf32, #tpu.memory_space<vmem>>, vector<4x256xf32>,
    %c0_15 = arith.constant 0 : index
    %c113 = arith.constant 113 : index
    %34 = vector.load %arg8[%c0_15, %c113] : memref<4x512xf32, #tpu.memory_space<vmem>>, vector<4x256xf32>
    %cst_16 = arith.constant 0.000000e+00 : f32
    %35 = vector.shape_cast %20 : vector<1x256xi1> to vector<1x256xi1>
    %36 = vector.broadcast %35 : vector<1x256xi1> to vector<4x256xi1>
    %37 = vector.broadcast %cst_16 : f32 to vector<4x256xf32>
    %38 = arith.select %36, %34, %37 : vector<4x256xi1>, vector<4x256xf32>
    %c8 = arith.constant 8 : index
    %c0_17 = arith.constant 0 : index
    %39 = vector.load %arg9[%c8, %c0_17] : memref<36x256xf32, #tpu.memory_space<vmem>>, vector<4x256xf32>
    tpu.vector_store %arg9[%c8, %c0_17], %38 {strides = array<i32>} : memref<36x256xf32, #tpu.memory_space<vmem>>, vector<4x256xf32>,
    %c0_18 = arith.constant 0 : index
    %c127 = arith.constant 127 : index
    %40 = vector.load %arg8[%c0_18, %c127] : memref<4x512xf32, #tpu.memory_space<vmem>>, vector<4x256xf32>
    %cst_19 = arith.constant 0.000000e+00 : f32
    %41 = vector.shape_cast %22 : vector<1x256xi1> to vector<1x256xi1>
    %42 = vector.broadcast %41 : vector<1x256xi1> to vector<4x256xi1>
    %43 = vector.broadcast %cst_19 : f32 to vector<4x256xf32>
    %44 = arith.select %42, %40, %43 : vector<4x256xi1>, vector<4x256xf32>
    %c12 = arith.constant 12 : index
    %c0_20 = arith.constant 0 : index
    %45 = vector.load %arg9[%c12, %c0_20] : memref<36x256xf32, #tpu.memory_space<vmem>>, vector<4x256xf32>
    tpu.vector_store %arg9[%c12, %c0_20], %44 {strides = array<i32>} : memref<36x256xf32, #tpu.memory_space<vmem>>, vector<4x256xf32>,
    %c0_21 = arith.constant 0 : index
    %c128_22 = arith.constant 128 : index
    %46 = vector.load %arg8[%c0_21, %c128_22] : memref<4x512xf32, #tpu.memory_space<vmem>>, vector<4x256xf32>
    %c16 = arith.constant 16 : index
    %c0_23 = arith.constant 0 : index
    %47 = vector.load %arg9[%c16, %c0_23] : memref<36x256xf32, #tpu.memory_space<vmem>>, vector<4x256xf32>
    tpu.vector_store %arg9[%c16, %c0_23], %46 {strides = array<i32>} : memref<36x256xf32, #tpu.memory_space<vmem>>, vector<4x256xf32>,
    %c0_24 = arith.constant 0 : index
    %c129 = arith.constant 129 : index
    %48 = vector.load %arg8[%c0_24, %c129] : memref<4x512xf32, #tpu.memory_space<vmem>>, vector<4x256xf32>
    %cst_25 = arith.constant 0.000000e+00 : f32
    %49 = vector.shape_cast %20 : vector<1x256xi1> to vector<1x256xi1>
    %50 = vector.broadcast %49 : vector<1x256xi1> to vector<4x256xi1>
    %51 = vector.broadcast %cst_25 : f32 to vector<4x256xf32>
    %52 = arith.select %50, %48, %51 : vector<4x256xi1>, vector<4x256xf32>
    %c20 = arith.constant 20 : index
    %c0_26 = arith.constant 0 : index
    %53 = vector.load %arg9[%c20, %c0_26] : memref<36x256xf32, #tpu.memory_space<vmem>>, vector<4x256xf32>
    tpu.vector_store %arg9[%c20, %c0_26], %52 {strides = array<i32>} : memref<36x256xf32, #tpu.memory_space<vmem>>, vector<4x256xf32>,
    %c0_27 = arith.constant 0 : index
    %c143 = arith.constant 143 : index
    %54 = vector.load %arg8[%c0_27, %c143] : memref<4x512xf32, #tpu.memory_space<vmem>>, vector<4x256xf32>
    %cst_28 = arith.constant 0.000000e+00 : f32
    %55 = vector.shape_cast %22 : vector<1x256xi1> to vector<1x256xi1>
    %56 = vector.broadcast %55 : vector<1x256xi1> to vector<4x256xi1>
    %57 = vector.broadcast %cst_28 : f32 to vector<4x256xf32>
    %58 = arith.select %56, %54, %57 : vector<4x256xi1>, vector<4x256xf32>
    %c24 = arith.constant 24 : index
    %c0_29 = arith.constant 0 : index
    %59 = vector.load %arg9[%c24, %c0_29] : memref<36x256xf32, #tpu.memory_space<vmem>>, vector<4x256xf32>
    tpu.vector_store %arg9[%c24, %c0_29], %58 {strides = array<i32>} : memref<36x256xf32, #tpu.memory_space<vmem>>, vector<4x256xf32>,
    %c0_30 = arith.constant 0 : index
    %c144 = arith.constant 144 : index
    %60 = vector.load %arg8[%c0_30, %c144] : memref<4x512xf32, #tpu.memory_space<vmem>>, vector<4x256xf32>
    %c28 = arith.constant 28 : index
    %c0_31 = arith.constant 0 : index
    %61 = vector.load %arg9[%c28, %c0_31] : memref<36x256xf32, #tpu.memory_space<vmem>>, vector<4x256xf32>
    tpu.vector_store %arg9[%c28, %c0_31], %60 {strides = array<i32>} : memref<36x256xf32, #tpu.memory_space<vmem>>, vector<4x256xf32>,
    %c0_32 = arith.constant 0 : index
    %c145 = arith.constant 145 : index
    %62 = vector.load %arg8[%c0_32, %c145] : memref<4x512xf32, #tpu.memory_space<vmem>>, vector<4x256xf32>
    %cst_33 = arith.constant 0.000000e+00 : f32
    %63 = vector.shape_cast %20 : vector<1x256xi1> to vector<1x256xi1>
    %64 = vector.broadcast %63 : vector<1x256xi1> to vector<4x256xi1>
    %65 = vector.broadcast %cst_33 : f32 to vector<4x256xf32>
    %66 = arith.select %64, %62, %65 : vector<4x256xi1>, vector<4x256xf32>
    %c32 = arith.constant 32 : index
    %c0_34 = arith.constant 0 : index
    %67 = vector.load %arg9[%c32, %c0_34] : memref<36x256xf32, #tpu.memory_space<vmem>>, vector<4x256xf32>
    tpu.vector_store %arg9[%c32, %c0_34], %66 {strides = array<i32>} : memref<36x256xf32, #tpu.memory_space<vmem>>, vector<4x256xf32>,
    %c0_35 = arith.constant 0 : index
    %c0_36 = arith.constant 0 : index
    %68 = vector.load %arg2[%c0_35, %c0_36] : memref<4x36xf32, #tpu.memory_space<vmem>>, vector<4x36xf32>
    %c0_37 = arith.constant 0 : index
    %c0_38 = arith.constant 0 : index
    %69 = vector.load %arg9[%c0_37, %c0_38] : memref<36x256xf32, #tpu.memory_space<vmem>>, vector<36x256xf32>
    %cst_39 = arith.constant dense<0.000000e+00> : vector<4x256xf32>
    %70 = tpu.matmul %68, %69, %cst_39 {dimension_numbers = #tpu.dot_dimension_numbers<[1], [0], [0], [1], [0, 0, 1, 1], [], []>} : vector<4x36xf32>, vector<36x256xf32>, vector<4x256xf32> -> vector<4x256xf32>
    %c0_40 = arith.constant 0 : index
    %c0_41 = arith.constant 0 : index
    %71 = vector.load %arg3[%c0_40, %c0_41] : memref<4x1xf32, #tpu.memory_space<vmem>>, vector<4x1xf32>
    %72 = vector.broadcast %71 : vector<4x1xf32> to vector<4x256xf32>
    %73 = arith.addf %70, %72 : vector<4x256xf32>
    %cst_42 = arith.constant 0.000000e+00 : f32
    %74 = vector.broadcast %cst_42 : f32 to vector<4x256xf32>
    %75 = arith.maximumf %73, %74 : vector<4x256xf32>
    %c0_43 = arith.constant 0 : index
    %c128_44 = arith.constant 128 : index
    %76 = vector.load %arg8[%c0_43, %c128_44] : memref<4x512xf32, #tpu.memory_space<vmem>>, vector<4x256xf32>
    tpu.vector_store %arg8[%c0_43, %c128_44], %75 {strides = array<i32>} : memref<4x512xf32, #tpu.memory_space<vmem>>, vector<4x256xf32>,
    %c0_45 = arith.constant 0 : index
    %c111_46 = arith.constant 111 : index
    %77 = vector.load %arg8[%c0_45, %c111_46] : memref<4x512xf32, #tpu.memory_space<vmem>>, vector<4x256xf32>
    %cst_47 = arith.constant 0.000000e+00 : f32
    %78 = vector.shape_cast %22 : vector<1x256xi1> to vector<1x256xi1>
    %79 = vector.broadcast %78 : vector<1x256xi1> to vector<4x256xi1>
    %80 = vector.broadcast %cst_47 : f32 to vector<4x256xf32>
    %81 = arith.select %79, %77, %80 : vector<4x256xi1>, vector<4x256xf32>
    %c0_48 = arith.constant 0 : index
    %c0_49 = arith.constant 0 : index
    %82 = vector.load %arg9[%c0_48, %c0_49] : memref<36x256xf32, #tpu.memory_space<vmem>>, vector<4x256xf32>
    tpu.vector_store %arg9[%c0_48, %c0_49], %81 {strides = array<i32>} : memref<36x256xf32, #tpu.memory_space<vmem>>, vector<4x256xf32>,
    %c0_50 = arith.constant 0 : index
    %c112_51 = arith.constant 112 : index
    %83 = vector.load %arg8[%c0_50, %c112_51] : memref<4x512xf32, #tpu.memory_space<vmem>>, vector<4x256xf32>
    %c4_52 = arith.constant 4 : index
    %c0_53 = arith.constant 0 : index
    %84 = vector.load %arg9[%c4_52, %c0_53] : memref<36x256xf32, #tpu.memory_space<vmem>>, vector<4x256xf32>
    tpu.vector_store %arg9[%c4_52, %c0_53], %83 {strides = array<i32>} : memref<36x256xf32, #tpu.memory_space<vmem>>, vector<4x256xf32>,
    %c0_54 = arith.constant 0 : index
    %c113_55 = arith.constant 113 : index
    %85 = vector.load %arg8[%c0_54, %c113_55] : memref<4x512xf32, #tpu.memory_space<vmem>>, vector<4x256xf32>
    %cst_56 = arith.constant 0.000000e+00 : f32
    %86 = vector.shape_cast %20 : vector<1x256xi1> to vector<1x256xi1>
    %87 = vector.broadcast %86 : vector<1x256xi1> to vector<4x256xi1>
    %88 = vector.broadcast %cst_56 : f32 to vector<4x256xf32>
    %89 = arith.select %87, %85, %88 : vector<4x256xi1>, vector<4x256xf32>
    %c8_57 = arith.constant 8 : index
    %c0_58 = arith.constant 0 : index
    %90 = vector.load %arg9[%c8_57, %c0_58] : memref<36x256xf32, #tpu.memory_space<vmem>>, vector<4x256xf32>
    tpu.vector_store %arg9[%c8_57, %c0_58], %89 {strides = array<i32>} : memref<36x256xf32, #tpu.memory_space<vmem>>, vector<4x256xf32>,
    %c0_59 = arith.constant 0 : index
    %c127_60 = arith.constant 127 : index
    %91 = vector.load %arg8[%c0_59, %c127_60] : memref<4x512xf32, #tpu.memory_space<vmem>>, vector<4x256xf32>
    %cst_61 = arith.constant 0.000000e+00 : f32
    %92 = vector.shape_cast %22 : vector<1x256xi1> to vector<1x256xi1>
    %93 = vector.broadcast %92 : vector<1x256xi1> to vector<4x256xi1>
    %94 = vector.broadcast %cst_61 : f32 to vector<4x256xf32>
    %95 = arith.select %93, %91, %94 : vector<4x256xi1>, vector<4x256xf32>
    %c12_62 = arith.constant 12 : index
    %c0_63 = arith.constant 0 : index
    %96 = vector.load %arg9[%c12_62, %c0_63] : memref<36x256xf32, #tpu.memory_space<vmem>>, vector<4x256xf32>
    tpu.vector_store %arg9[%c12_62, %c0_63], %95 {strides = array<i32>} : memref<36x256xf32, #tpu.memory_space<vmem>>, vector<4x256xf32>,
    %c0_64 = arith.constant 0 : index
    %c128_65 = arith.constant 128 : index
    %97 = vector.load %arg8[%c0_64, %c128_65] : memref<4x512xf32, #tpu.memory_space<vmem>>, vector<4x256xf32>
    %c16_66 = arith.constant 16 : index
    %c0_67 = arith.constant 0 : index
    %98 = vector.load %arg9[%c16_66, %c0_67] : memref<36x256xf32, #tpu.memory_space<vmem>>, vector<4x256xf32>
    tpu.vector_store %arg9[%c16_66, %c0_67], %97 {strides = array<i32>} : memref<36x256xf32, #tpu.memory_space<vmem>>, vector<4x256xf32>,
    %c0_68 = arith.constant 0 : index
    %c129_69 = arith.constant 129 : index
    %99 = vector.load %arg8[%c0_68, %c129_69] : memref<4x512xf32, #tpu.memory_space<vmem>>, vector<4x256xf32>
    %cst_70 = arith.constant 0.000000e+00 : f32
    %100 = vector.shape_cast %20 : vector<1x256xi1> to vector<1x256xi1>
    %101 = vector.broadcast %100 : vector<1x256xi1> to vector<4x256xi1>
    %102 = vector.broadcast %cst_70 : f32 to vector<4x256xf32>
    %103 = arith.select %101, %99, %102 : vector<4x256xi1>, vector<4x256xf32>
    %c20_71 = arith.constant 20 : index
    %c0_72 = arith.constant 0 : index
    %104 = vector.load %arg9[%c20_71, %c0_72] : memref<36x256xf32, #tpu.memory_space<vmem>>, vector<4x256xf32>
    tpu.vector_store %arg9[%c20_71, %c0_72], %103 {strides = array<i32>} : memref<36x256xf32, #tpu.memory_space<vmem>>, vector<4x256xf32>,
    %c0_73 = arith.constant 0 : index
    %c143_74 = arith.constant 143 : index
    %105 = vector.load %arg8[%c0_73, %c143_74] : memref<4x512xf32, #tpu.memory_space<vmem>>, vector<4x256xf32>
    %cst_75 = arith.constant 0.000000e+00 : f32
    %106 = vector.shape_cast %22 : vector<1x256xi1> to vector<1x256xi1>
    %107 = vector.broadcast %106 : vector<1x256xi1> to vector<4x256xi1>
    %108 = vector.broadcast %cst_75 : f32 to vector<4x256xf32>
    %109 = arith.select %107, %105, %108 : vector<4x256xi1>, vector<4x256xf32>
    %c24_76 = arith.constant 24 : index
    %c0_77 = arith.constant 0 : index
    %110 = vector.load %arg9[%c24_76, %c0_77] : memref<36x256xf32, #tpu.memory_space<vmem>>, vector<4x256xf32>
    tpu.vector_store %arg9[%c24_76, %c0_77], %109 {strides = array<i32>} : memref<36x256xf32, #tpu.memory_space<vmem>>, vector<4x256xf32>,
    %c0_78 = arith.constant 0 : index
    %c144_79 = arith.constant 144 : index
    %111 = vector.load %arg8[%c0_78, %c144_79] : memref<4x512xf32, #tpu.memory_space<vmem>>, vector<4x256xf32>
    %c28_80 = arith.constant 28 : index
    %c0_81 = arith.constant 0 : index
    %112 = vector.load %arg9[%c28_80, %c0_81] : memref<36x256xf32, #tpu.memory_space<vmem>>, vector<4x256xf32>
    tpu.vector_store %arg9[%c28_80, %c0_81], %111 {strides = array<i32>} : memref<36x256xf32, #tpu.memory_space<vmem>>, vector<4x256xf32>,
    %c0_82 = arith.constant 0 : index
    %c145_83 = arith.constant 145 : index
    %113 = vector.load %arg8[%c0_82, %c145_83] : memref<4x512xf32, #tpu.memory_space<vmem>>, vector<4x256xf32>
    %cst_84 = arith.constant 0.000000e+00 : f32
    %114 = vector.shape_cast %20 : vector<1x256xi1> to vector<1x256xi1>
    %115 = vector.broadcast %114 : vector<1x256xi1> to vector<4x256xi1>
    %116 = vector.broadcast %cst_84 : f32 to vector<4x256xf32>
    %117 = arith.select %115, %113, %116 : vector<4x256xi1>, vector<4x256xf32>
    %c32_85 = arith.constant 32 : index
    %c0_86 = arith.constant 0 : index
    %118 = vector.load %arg9[%c32_85, %c0_86] : memref<36x256xf32, #tpu.memory_space<vmem>>, vector<4x256xf32>
    tpu.vector_store %arg9[%c32_85, %c0_86], %117 {strides = array<i32>} : memref<36x256xf32, #tpu.memory_space<vmem>>, vector<4x256xf32>,
    %c0_87 = arith.constant 0 : index
    %c0_88 = arith.constant 0 : index
    %119 = vector.load %arg4[%c0_87, %c0_88] : memref<4x36xf32, #tpu.memory_space<vmem>>, vector<4x36xf32>
    %c0_89 = arith.constant 0 : index
    %c0_90 = arith.constant 0 : index
    %120 = vector.load %arg9[%c0_89, %c0_90] : memref<36x256xf32, #tpu.memory_space<vmem>>, vector<36x256xf32>
    %cst_91 = arith.constant dense<0.000000e+00> : vector<4x256xf32>
    %121 = tpu.matmul %119, %120, %cst_91 {dimension_numbers = #tpu.dot_dimension_numbers<[1], [0], [0], [1], [0, 0, 1, 1], [], []>} : vector<4x36xf32>, vector<36x256xf32>, vector<4x256xf32> -> vector<4x256xf32>
    %122 = arith.addf %121, %24 : vector<4x256xf32>
    %c0_92 = arith.constant 0 : index
    %c0_93 = arith.constant 0 : index
    %123 = vector.load %arg5[%c0_92, %c0_93] : memref<4x1xf32, #tpu.memory_space<vmem>>, vector<4x1xf32>
    %124 = vector.broadcast %123 : vector<4x1xf32> to vector<4x256xf32>
    %125 = arith.mulf %122, %124 : vector<4x256xf32>
    %c0_94 = arith.constant 0 : index
    %c0_95 = arith.constant 0 : index
    %126 = vector.load %arg6[%c0_94, %c0_95] : memref<4x1xf32, #tpu.memory_space<vmem>>, vector<4x1xf32>
    %127 = vector.broadcast %126 : vector<4x1xf32> to vector<4x256xf32>
    %128 = arith.addf %125, %127 : vector<4x256xf32>
    %cst_96 = arith.constant 0.000000e+00 : f32
    %129 = vector.broadcast %cst_96 : f32 to vector<4x256xf32>
    %130 = arith.maximumf %128, %129 : vector<4x256xf32>
    %c0_97 = arith.constant 0 : index
    %c0_98 = arith.constant 0 : index
    %c0_99 = arith.constant 0 : index
    %131 = vector.load %arg7[%c0_97, %c0_98, %c0_99] : memref<1x4x256xf32, #tpu.memory_space<vmem>>, vector<1x4x256xf32>
    %132 = vector.shape_cast %131 : vector<1x4x256xf32> to vector<4x256xf32>
    %133 = vector.shape_cast %130 : vector<4x256xf32> to vector<1x4x256xf32>
    tpu.vector_store %arg7[%c0_97, %c0_98, %c0_99], %133 {strides = array<i32>} : memref<1x4x256xf32, #tpu.memory_space<vmem>>, vector<1x4x256xf32>,
    return
  }
  func.func @transform_0(%arg0: i32) -> (i32, i32, i32) {
    %c0_i32 = arith.constant 0 : i32
    %c0_i32_0 = arith.constant 0 : i32
    %c0_i32_1 = arith.constant 0 : i32
    return %arg0, %c0_i32, %c0_i32_0 : i32, i32, i32
  }
  func.func @transform_1(%arg0: i32) -> (i32, i32) {
    %c0_i32 = arith.constant 0 : i32
    %c0_i32_0 = arith.constant 0 : i32
    %c0_i32_1 = arith.constant 0 : i32
    return %c0_i32, %c0_i32_0 : i32, i32
  }
  func.func @transform_2(%arg0: i32) -> (i32, i32) {
    %c0_i32 = arith.constant 0 : i32
    %c0_i32_0 = arith.constant 0 : i32
    %c0_i32_1 = arith.constant 0 : i32
    return %c0_i32, %c0_i32_0 : i32, i32
  }
  func.func @transform_3(%arg0: i32) -> (i32, i32) {
    %c0_i32 = arith.constant 0 : i32
    %c0_i32_0 = arith.constant 0 : i32
    %c0_i32_1 = arith.constant 0 : i32
    return %c0_i32, %c0_i32_0 : i32, i32
  }
  func.func @transform_4(%arg0: i32) -> (i32, i32) {
    %c0_i32 = arith.constant 0 : i32
    %c0_i32_0 = arith.constant 0 : i32
    %c0_i32_1 = arith.constant 0 : i32
    return %c0_i32, %c0_i32_0 : i32, i32
  }
  func.func @transform_5(%arg0: i32) -> (i32, i32) {
    %c0_i32 = arith.constant 0 : i32
    %c0_i32_0 = arith.constant 0 : i32
    %c0_i32_1 = arith.constant 0 : i32
    return %c0_i32, %c0_i32_0 : i32, i32
  }
  func.func @transform_6(%arg0: i32) -> (i32, i32, i32) {
    %c0_i32 = arith.constant 0 : i32
    %c0_i32_0 = arith.constant 0 : i32
    %c0_i32_1 = arith.constant 0 : i32
    return %arg0, %c0_i32, %c0_i32_0 : i32, i32, i32
  }
}

</mosaic_0001>

<llo_original>
// kernel: basic_block_forward.1
$region0: #{basic_block_forward.1}
  #allocation0 [shape = 'u32[]', space=smem, size = 0x4, offset = 0x4, fixed_abs, tag = 'smem constant byte address 0x4 - core index']
  #allocation1 [shape = 'u32[72,128]{1,0:T(1,128)}', space=vmem, size = 0x9000, scoped, tag = 'internal scratch']
  #allocation2 [shape = 'f32[4,512]{1,0:T(4,128)}', space=vmem, size = 0x2000, scoped, tag = 'scratch operand']
  #allocation3 [shape = 'f32[36,256]{1,0:T(8,128)}', space=vmem, size = 0xa000, scoped, tag = 'scratch operand']
  %s0 = inlined_call_operand.vmem [shape: f32[2,4,256], index: 0, kind: input, shape index: {}]
  %s1 = inlined_call_operand.vmem [shape: f32[4,36], index: 1, kind: input, shape index: {}]
  %s2 = inlined_call_operand.vmem [shape: f32[4,1], index: 2, kind: input, shape index: {}]
  %s3 = inlined_call_operand.vmem [shape: f32[4,36], index: 3, kind: input, shape index: {}]
  %s4 = inlined_call_operand.vmem [shape: f32[4,1], index: 4, kind: input, shape index: {}]
  %s5 = inlined_call_operand.vmem [shape: f32[4,1], index: 5, kind: input, shape index: {}]
  %s6 = inlined_call_operand.vmem [shape: f32[2,4,256], index: 6, kind: output, shape index: {}]
  %s7 = sld [smem:[#allocation0]]
  $region57: #{basic_block_forward.1} parent=0
    _
  %s9 = ssub.s32 1, %s7
  %s10 = scalar_select 0, %s9, %s7
  loop: start=0, step=1, limit=4
  $region2: #{basic_block_forward.1} parent=0 // loop_pre_header
    _
  $region3: #{basic_block_forward.1} parent=0 // loop_header
    %s12 = sphi 0, %s16
    %p13 = scmp.ge.s32.totalorder %s12, 4
    %s22 = sphi 0, %s24
    %s25 = sphi 0, %s22
    %s26 = sphi 0, %s25
    %s42 = sphi 0, %s26
    %s46 = sphi 0, %s46
    %s48 = sphi 0, %s46
    %s49 = sphi 0, %s48
    %s63 = sphi 0, %s49
    %s67 = sphi 0, %s67
    %s69 = sphi 0, %s67
    %s70 = sphi 0, %s69
    %s84 = sphi 0, %s70
    %s88 = sphi 0, %s88
    %s90 = sphi 0, %s88
    %s91 = sphi 0, %s90
    %s105 = sphi 0, %s91
    %s109 = sphi 0, %s109
    %s111 = sphi 0, %s109
    %s112 = sphi 0, %s111
    %s126 = sphi 0, %s112
    %s130 = sphi 0, %s130
    %s132 = sphi 0, %s130
    %s133 = sphi 0, %s132
    %s147 = sphi 0, %s133
    %s153 = sphi 0, %s155
    %s156 = sphi 0, %s153
    %s157 = sphi 0, %s156
    %s173 = sphi 0, %s157
  $region4: #{basic_block_forward.1} parent=0 // loop_header_branch
    %15 = sbr.rel (%p13) target = $region8
  $region5: #{basic_block_forward.1} parent=0 // loop_body
    %s17 = ssub.s32 %s12, 1
    %s18 = ssub.s32 %s12, 2
    %s19 = sadd.s32 %s12, 1
    %s20 = ssub.s32 %s12, %s19
    %p21 = scmp.eq.s32.totalorder %s20, 0
    %s23 = sadd.s32 %s22, 1
    %s24 = scalar_select %p21, %s22, %s23
    %p27 = pneg %p21
    %p28 = scmp.eq.s32.totalorder %s12, 1
    %p29 = por %p27, %p28
    %p30 = scmp.ne.s32.totalorder %s22, %s25
    %p31 = scmp.eq.s32.totalorder %s12, 0
    %p32 = por %p30, %p31
    %p33 = scmp.ne.s32.totalorder %s22, %s25
    %p34 = scmp.eq.s32.totalorder %s17, 1
    %p35 = por %p33, %p34
    %p36 = scmp.ne.s32.totalorder %s25, %s26
    %p37 = scmp.eq.s32.totalorder %s17, 0
    %p38 = por %p36, %p37
    %p39 = scmp.ne.s32.totalorder %s25, %s26
    %p40 = scmp.eq.s32.totalorder %s18, 1
    %p41 = por %p39, %p40
    %p43 = scmp.ne.s32.totalorder %s26, %s42
    %p44 = scmp.eq.s32.totalorder %s18, 0
    %p45 = por %p43, %p44
    %s47 = sadd.s32 %s46, 1
    %p50 = scmp.eq.s32.totalorder %s12, 1
    %p51 = scmp.ne.s32.totalorder %s46, %s48
    %p52 = scmp.eq.s32.totalorder %s12, 0
    %p53 = por %p51, %p52
    %p54 = scmp.ne.s32.totalorder %s46, %s48
    %p55 = scmp.eq.s32.totalorder %s17, 1
    %p56 = por %p54, %p55
    %p57 = scmp.ne.s32.totalorder %s48, %s49
    %p58 = scmp.eq.s32.totalorder %s17, 0
    %p59 = por %p57, %p58
    %p60 = scmp.ne.s32.totalorder %s48, %s49
    %p61 = scmp.eq.s32.totalorder %s18, 1
    %p62 = por %p60, %p61
    %p64 = scmp.ne.s32.totalorder %s49, %s63
    %p65 = scmp.eq.s32.totalorder %s18, 0
    %p66 = por %p64, %p65
    %s68 = sadd.s32 %s67, 1
    %p71 = scmp.eq.s32.totalorder %s12, 1
    %p72 = scmp.ne.s32.totalorder %s67, %s69
    %p73 = scmp.eq.s32.totalorder %s12, 0
    %p74 = por %p72, %p73
    %p75 = scmp.ne.s32.totalorder %s67, %s69
    %p76 = scmp.eq.s32.totalorder %s17, 1
    %p77 = por %p75, %p76
    %p78 = scmp.ne.s32.totalorder %s69, %s70
    %p79 = scmp.eq.s32.totalorder %s17, 0
    %p80 = por %p78, %p79
    %p81 = scmp.ne.s32.totalorder %s69, %s70
    %p82 = scmp.eq.s32.totalorder %s18, 1
    %p83 = por %p81, %p82
    %p85 = scmp.ne.s32.totalorder %s70, %s84
    %p86 = scmp.eq.s32.totalorder %s18, 0
    %p87 = por %p85, %p86
    %s89 = sadd.s32 %s88, 1
    %p92 = scmp.eq.s32.totalorder %s12, 1
    %p93 = scmp.ne.s32.totalorder %s88, %s90
    %p94 = scmp.eq.s32.totalorder %s12, 0
    %p95 = por %p93, %p94
    %p96 = scmp.ne.s32.totalorder %s88, %s90
    %p97 = scmp.eq.s32.totalorder %s17, 1
    %p98 = por %p96, %p97
    %p99 = scmp.ne.s32.totalorder %s90, %s91
    %p100 = scmp.eq.s32.totalorder %s17, 0
    %p101 = por %p99, %p100
    %p102 = scmp.ne.s32.totalorder %s90, %s91
    %p103 = scmp.eq.s32.totalorder %s18, 1
    %p104 = por %p102, %p103
    %p106 = scmp.ne.s32.totalorder %s91, %s105
    %p107 = scmp.eq.s32.totalorder %s18, 0
    %p108 = por %p106, %p107
    %s110 = sadd.s32 %s109, 1
    %p113 = scmp.eq.s32.totalorder %s12, 1
    %p114 = scmp.ne.s32.totalorder %s109, %s111
    %p115 = scmp.eq.s32.totalorder %s12, 0
    %p116 = por %p114, %p115
    %p117 = scmp.ne.s32.totalorder %s109, %s111
    %p118 = scmp.eq.s32.totalorder %s17, 1
    %p119 = por %p117, %p118
    %p120 = scmp.ne.s32.totalorder %s111, %s112
    %p121 = scmp.eq.s32.totalorder %s17, 0
    %p122 = por %p120, %p121
    %p123 = scmp.ne.s32.totalorder %s111, %s112
    %p124 = scmp.eq.s32.totalorder %s18, 1
    %p125 = por %p123, %p124
    %p127 = scmp.ne.s32.totalorder %s112, %s126
    %p128 = scmp.eq.s32.totalorder %s18, 0
    %p129 = por %p127, %p128
    %s131 = sadd.s32 %s130, 1
    %p134 = scmp.eq.s32.totalorder %s12, 1
    %p135 = scmp.ne.s32.totalorder %s130, %s132
    %p136 = scmp.eq.s32.totalorder %s12, 0
    %p137 = por %p135, %p136
    %p138 = scmp.ne.s32.totalorder %s130, %s132
    %p139 = scmp.eq.s32.totalorder %s17, 1
    %p140 = por %p138, %p139
    %p141 = scmp.ne.s32.totalorder %s132, %s133
    %p142 = scmp.eq.s32.totalorder %s17, 0
    %p143 = por %p141, %p142
    %p144 = scmp.ne.s32.totalorder %s132, %s133
    %p145 = scmp.eq.s32.totalorder %s18, 1
    %p146 = por %p144, %p145
    %p148 = scmp.ne.s32.totalorder %s133, %s147
    %p149 = scmp.eq.s32.totalorder %s18, 0
    %p150 = por %p148, %p149
    %s151 = ssub.s32 %s12, %s19
    %p152 = scmp.eq.s32.totalorder %s151, 0
    %s154 = sadd.s32 %s153, 1
    %s155 = scalar_select %p152, %s153, %s154
    %p158 = pneg %p152
    %p159 = scmp.eq.s32.totalorder %s12, 1
    %p160 = por %p158, %p159
    %p161 = scmp.ne.s32.totalorder %s153, %s156
    %p162 = scmp.eq.s32.totalorder %s12, 0
    %p163 = por %p161, %p162
    %p164 = scmp.ne.s32.totalorder %s153, %s156
    %p165 = scmp.eq.s32.totalorder %s17, 1
    %p166 = por %p164, %p165
    %p167 = scmp.ne.s32.totalorder %s156, %s157
    %p168 = scmp.eq.s32.totalorder %s17, 0
    %p169 = por %p167, %p168
    %p170 = scmp.ne.s32.totalorder %s156, %s157
    %p171 = scmp.eq.s32.totalorder %s18, 1
    %p172 = por %p170, %p171
    %p174 = scmp.ne.s32.totalorder %s157, %s173
    %p175 = scmp.eq.s32.totalorder %s18, 0
    %p176 = por %p174, %p175
    %p177 = scmp.le.s32.totalorder 1, %s12
    %p178 = scmp.lt.s32.totalorder %s12, 3
    %p179 = pnand %p177, %p178
    %p180 = pneg %p179
    // Predicated region
    $region9: #{basic_block_forward.1} parent=5 // pred_check
      _
    $region10: #{basic_block_forward.1} parent=5 // pred_check_branch
      %182 = sbr.rel (%p179) target = $region12
    $region11: #{basic_block_forward.1} parent=5 // pred_region
      %s183 = ssub.s32 %s12, 1
      // Predicated region
      $region13: #{basic_block_forward.1} parent=11 // pred_check
        %p184 = pneg %p59
      $region14: #{basic_block_forward.1} parent=11 // pred_check_branch
        %186 = sbr.rel (%p184) target = $region16
      $region15: #{basic_block_forward.1} parent=11 // pred_region
        _
      $region16: #{basic_block_forward.1} parent=11 // pred_fallthru
        _
      // Predicated region
      $region17: #{basic_block_forward.1} parent=11 // pred_check
        %p187 = pneg %p80
      $region18: #{basic_block_forward.1} parent=11 // pred_check_branch
        %189 = sbr.rel (%p187) target = $region20
      $region19: #{basic_block_forward.1} parent=11 // pred_region
        _
      $region20: #{basic_block_forward.1} parent=11 // pred_fallthru
        _
      // Predicated region
      $region21: #{basic_block_forward.1} parent=11 // pred_check
        %p190 = pneg %p101
      $region22: #{basic_block_forward.1} parent=11 // pred_check_branch
        %192 = sbr.rel (%p190) target = $region24
      $region23: #{basic_block_forward.1} parent=11 // pred_region
        _
      $region24: #{basic_block_forward.1} parent=11 // pred_fallthru
        _
      // Predicated region
      $region25: #{basic_block_forward.1} parent=11 // pred_check
        %p193 = pneg %p122
      $region26: #{basic_block_forward.1} parent=11 // pred_check_branch
        %195 = sbr.rel (%p193) target = $region28
      $region27: #{basic_block_forward.1} parent=11 // pred_region
        _
      $region28: #{basic_block_forward.1} parent=11 // pred_fallthru
        _
      // Predicated region
      $region29: #{basic_block_forward.1} parent=11 // pred_check
        %p196 = pneg %p143
      $region30: #{basic_block_forward.1} parent=11 // pred_check_branch
        %198 = sbr.rel (%p196) target = $region32
      $region31: #{basic_block_forward.1} parent=11 // pred_region
        _
      $region32: #{basic_block_forward.1} parent=11 // pred_fallthru
        _
    $region12: #{basic_block_forward.1} parent=5 // pred_fallthru
      _
    %p199 = scmp.lt.s32.totalorder %s12, 2
    // Predicated region
    $region33: #{basic_block_forward.1} parent=5 // pred_check
      %p200 = pneg %p199
    $region34: #{basic_block_forward.1} parent=5 // pred_check_branch
      %202 = sbr.rel (%p200) target = $region36
    $region35: #{basic_block_forward.1} parent=5 // pred_region
      // Predicated region
      $region37: #{basic_block_forward.1} parent=35 // pred_check
        %p203 = pneg %p32
      $region38: #{basic_block_forward.1} parent=35 // pred_check_branch
        %205 = sbr.rel (%p203) target = $region40
      $region39: #{basic_block_forward.1} parent=35 // pred_region
        %p206 = scmp.lt.s32.totalorder %s12, 1
        %s207 = scalar_select %p206, %s12, 1
        %s208 = smul.addr %s207, 2
        %s209 = smul.addr %s208, 4
        %s210 = scalar_lea.vmem %s0, %s209
      $region40: #{basic_block_forward.1} parent=35 // pred_fallthru
        _
    $region36: #{basic_block_forward.1} parent=5 // pred_fallthru
      _
    %p211 = scmp.le.s32.totalorder 1, %s12
    %p212 = scmp.lt.s32.totalorder %s12, 3
    %p213 = pnand %p211, %p212
    %p214 = pneg %p213
    // Predicated region
    $region41: #{basic_block_forward.1} parent=5 // pred_check
      _
    $region42: #{basic_block_forward.1} parent=5 // pred_check_branch
      %216 = sbr.rel (%p213) target = $region44
    $region43: #{basic_block_forward.1} parent=5 // pred_region
      %s217 = ssub.s32 %s12, 1
      %p218 = scmp.lt.s32.totalorder %s17, 1
      %s219 = scalar_select %p218, %s17, 1
      %s220 = smul.addr %s219, 2
      %s221 = smul.addr %s220, 4
      %s222 = scalar_lea.vmem %s0, %s221
      %p223 = pneg %p38
      %p224 = pneg %p35
      %p225 = pneg %p59
      %p226 = pneg %p56
      %p227 = pneg %p80
      %p228 = pneg %p77
      %p229 = pneg %p101
      %p230 = pneg %p98
      %p231 = pneg %p122
      %p232 = pneg %p119
      %p233 = pneg %p143
      %p234 = pneg %p140
      %p235 = pneg %p169
      %p236 = pneg %p166
      %p237 = scmp.lt.s32.totalorder %s17, 1
      %s238 = scalar_select %p237, %s17, 1
      %s239 = smul.addr %s238, 2
      %s240 = smul.addr %s239, 4
      %s241 = scalar_lea.vmem %s6, %s240
      %p242 = scmp.lt.s32.totalorder %s17, 1
      %s243 = scalar_select %p242, %s17, 1
      %s244 = smul.addr %s243, 2
      %s245 = smul.addr %s244, 4
      %s246 = scalar_lea.vmem %s0, %s245
      %p247 = scmp.lt.s32.totalorder %s17, 1
      %s248 = scalar_select %p247, %s17, 1
      %s249 = smul.addr %s248, 2
      %s250 = smul.addr %s249, 4
      %s251 = scalar_lea.vmem %s6, %s250
      %252 = vst [vmem:[#allocation2] sm:$0xff] 0.0
      %253 = vst [vmem:[#allocation2 + $0x8] sm:$0xff] 0.0
      %v254 = vlaneseq
      %v255 = vand.u32 %v254, 127
      %v256 = vadd.s32 %v255, 128
      %vm257 = vcmp.lt.s32.totalorder %v255, 0
      %v258 = vsub.s32 0, %v255
      %v259 = vsel %vm257, %v258, %v255
      %v260 = vshrl.u32 %v259, 4
      %v261 = vand.u32 %v259, 15
      %v262 = vsub.s32 0, %v261
      %v263 = vsel %vm257, %v262, %v261
      %vm264 = vcmp.lt.s32.totalorder %v256, 0
      %v265 = vsub.s32 0, %v256
      %v266 = vsel %vm264, %v265, %v256
      %v267 = vshrl.u32 %v266, 4
      %v268 = vand.u32 %v266, 15
      %v269 = vsub.s32 0, %v268
      %v270 = vsel %vm264, %v269, %v268
      %vm271 = vcmp.ne.s32.totalorder %v263, 0
      %vm272 = vcmp.ne.s32.totalorder %v270, 0
      %vm273 = vcmp.lt.s32.totalorder %v263, 0
      %vm274 = vcmp.lt.s32.totalorder %v270, 0
      %vm275 = vmand %vm273, %vm271
      %vm276 = vmand %vm274, %vm272
      %v277 = vadd.s32 %v263, 16
      %v278 = vadd.s32 %v270, 16
      %v279 = vsel %vm275, %v277, %v263
      %v280 = vsel %vm276, %v278, %v270
      %vm281 = vcmp.lt.s32.totalorder %v279, 15
      %vm282 = vcmp.lt.s32.totalorder %v280, 15
      %vm283 = vcmp.gt.s32.totalorder %v279, 0
      %vm284 = vcmp.gt.s32.totalorder %v280, 0
      %v285 = vld [vmem:[%s246] sm:$0xff]
      %286 = vst [vmem:[#allocation2 + $0x4] sm:$0xff] %v285
      %v287 = vld [vmem:[#allocation2] sm:$0xff]
      %v288 = vld [vmem:[#allocation2 + $0x8] sm:$0xf]
      %v289 = vsel %vm283, 1, 0
      %v290 = vsel %vm284, 1, 0
      %vm291 = vcmp.eq.s32.totalorder %v289, 1
      %vm292 = vcmp.eq.s32.totalorder %v290, 1
      %295 = vst [vmem:[#allocation1] ss:$2 sm:$0xff] %v287
      %s296 = scalar_lea.vmem [#allocation1], 16
      %297 = vst [vmem:[%s296] ss:$2 sm:$0xff] %v288
      %v298 = vld.sshfl [vmem:[#allocation1] sm:$0xff pattern:$0x75316420]
      %v299 = vld.sshfl [vmem:[#allocation1 + $0x8] sm:$0xff pattern:$0x75316420]
      %v300 = vld.sshfl [vmem:[#allocation1 + $0x10] sm:$0xff pattern:$0x75316420]
      %301 = vrot.lane.b32.xlu0 %v298, 17
      %v302 = vpop.permute.xlu0 %301
      %303 = vrot.lane.b32.xlu0 %v299, 17
      %v304 = vpop.permute.xlu0 %303
      %305 = vrot.lane.b32.xlu0 %v300, 17
      %v306 = vpop.permute.xlu0 %305
      %vm307 = vcmask 138240
      %v308 = vsel %vm307, %v302, %v304
      %v309 = vsel %vm307, %v304, %v306
      %v312 = vsel %vm291, %v308, 0.0
      %v313 = vsel %vm292, %v309, 0.0
      %314 = vst [vmem:[#allocation3] sm:$0xf] %v312
      %315 = vst [vmem:[#allocation3 + $0x8] sm:$0xf] %v313
      %v316 = vld [vmem:[#allocation2] sm:$0xff]
      %v317 = vld [vmem:[#allocation2 + $0x8] sm:$0xf]
      %s320 = scalar_lea.vmem [#allocation1], 1
      %321 = vst [vmem:[%s320] ss:$2 sm:$0xff] %v316
      %s322 = scalar_lea.vmem [#allocation1], 17
      %323 = vst [vmem:[%s322] ss:$2 sm:$0xff] %v317
      %v324 = vld.sshfl [vmem:[#allocation1] sm:$0xff pattern:$0x75316420]
      %v325 = vld.sshfl [vmem:[#allocation1 + $0x8] sm:$0xff pattern:$0x75316420]
      %v326 = vld.sshfl [vmem:[#allocation1 + $0x10] sm:$0xff pattern:$0x75316420]
      %327 = vrot.lane.b32.xlu0 %v324, 16
      %v328 = vpop.permute.xlu0 %327
      %329 = vrot.lane.b32.xlu0 %v325, 16
      %v330 = vpop.permute.xlu0 %329
      %331 = vrot.lane.b32.xlu0 %v326, 16
      %v332 = vpop.permute.xlu0 %331
      %vm333 = vcmask 130048
      %v334 = vsel %vm333, %v328, %v330
      %v335 = vsel %vm333, %v330, %v332
      %338 = vst [vmem:[#allocation3] sm:$0xf0] %v334
      %339 = vst [vmem:[#allocation3 + $0x8] sm:$0xf0] %v335
      %v340 = vld [vmem:[#allocation2] sm:$0xff]
      %v341 = vld [vmem:[#allocation2 + $0x8] sm:$0xf]
      %v342 = vsel %vm281, 1, 0
      %v343 = vsel %vm282, 1, 0
      %vm344 = vcmp.eq.s32.totalorder %v342, 1
      %vm345 = vcmp.eq.s32.totalorder %v343, 1
      %348 = vst [vmem:[#allocation1] ss:$2 sm:$0xff] %v340
      %s349 = scalar_lea.vmem [#allocation1], 16
      %350 = vst [vmem:[%s349] ss:$2 sm:$0xff] %v341
      %v351 = vld.sshfl [vmem:[#allocation1] sm:$0xff pattern:$0x75316420]
      %v352 = vld.sshfl [vmem:[#allocation1 + $0x8] sm:$0xff pattern:$0x75316420]
      %v353 = vld.sshfl [vmem:[#allocation1 + $0x10] sm:$0xff pattern:$0x75316420]
      %354 = vrot.lane.b32.xlu0 %v351, 15
      %v355 = vpop.permute.xlu0 %354
      %356 = vrot.lane.b32.xlu0 %v352, 15
      %v357 = vpop.permute.xlu0 %356
      %358 = vrot.lane.b32.xlu0 %v353, 15
      %v359 = vpop.permute.xlu0 %358
      %vm360 = vcmask 121856
      %v361 = vsel %vm360, %v355, %v357
      %v362 = vsel %vm360, %v357, %v359
      %v365 = vsel %vm344, %v361, 0.0
      %v366 = vsel %vm345, %v362, 0.0
      %367 = vst [vmem:[#allocation3 + $0x10] sm:$0xf] %v365
      %368 = vst [vmem:[#allocation3 + $0x18] sm:$0xf] %v366
      %v369 = vld [vmem:[#allocation2] sm:$0xff]
      %v370 = vld [vmem:[#allocation2 + $0x8] sm:$0xf]
      %373 = vst [vmem:[#allocation1] ss:$2 sm:$0xff] %v369
      %s374 = scalar_lea.vmem [#allocation1], 16
      %375 = vst [vmem:[%s374] ss:$2 sm:$0xff] %v370
      %v376 = vld.sshfl [vmem:[#allocation1] sm:$0xff pattern:$0x75316420]
      %v377 = vld.sshfl [vmem:[#allocation1 + $0x8] sm:$0xff pattern:$0x75316420]
      %v378 = vld.sshfl [vmem:[#allocation1 + $0x10] sm:$0xff pattern:$0x75316420]
      %379 = vrot.lane.b32.xlu0 %v376, 1
      %v380 = vpop.permute.xlu0 %379
      %381 = vrot.lane.b32.xlu0 %v377, 1
      %v382 = vpop.permute.xlu0 %381
      %383 = vrot.lane.b32.xlu0 %v378, 1
      %v384 = vpop.permute.xlu0 %383
      %vm385 = vcmask 7168
      %v386 = vsel %vm385, %v380, %v382
      %v387 = vsel %vm385, %v382, %v384
      %v390 = vsel %vm291, %v386, 0.0
      %v391 = vsel %vm292, %v387, 0.0
      %v394 = vrot.slane %v390, 4
      %v395 = vrot.slane %v391, 4
      %398 = vst [vmem:[#allocation3 + $0x10] sm:$0xf0] %v394
      %399 = vst [vmem:[#allocation3 + $0x18] sm:$0xf0] %v395
      %v400 = vld [vmem:[#allocation2 + $0x4] sm:$0xff]
      %402 = vst [vmem:[#allocation1] ss:$2 sm:$0xff] %v400
      %v403 = vld.sshfl [vmem:[#allocation1] sm:$0xff pattern:$0x75316420]
      %v404 = vld.sshfl [vmem:[#allocation1 + $0x8] sm:$0xff pattern:$0x75316420]
      %407 = vst [vmem:[#allocation3 + $0x20] sm:$0xf] %v403
      %408 = vst [vmem:[#allocation3 + $0x28] sm:$0xf] %v404
      %v409 = vld [vmem:[#allocation2 + $0x4] sm:$0xff]
      %v410 = vld [vmem:[#allocation2 + $0xc] sm:$0xf]
      %413 = vst [vmem:[#allocation1] ss:$2 sm:$0xff] %v409
      %s414 = scalar_lea.vmem [#allocation1], 16
      %415 = vst [vmem:[%s414] ss:$2 sm:$0xff] %v410
      %v416 = vld.sshfl [vmem:[#allocation1] sm:$0xff pattern:$0x75316420]
      %v417 = vld.sshfl [vmem:[#allocation1 + $0x8] sm:$0xff pattern:$0x75316420]
      %v418 = vld.sshfl [vmem:[#allocation1 + $0x10] sm:$0xff pattern:$0x75316420]
      %419 = vrot.lane.b32.xlu0 %v416, 127
      %v420 = vpop.permute.xlu0 %419
      %421 = vrot.lane.b32.xlu0 %v417, 127
      %v422 = vpop.permute.xlu0 %421
      %423 = vrot.lane.b32.xlu0 %v418, 127
      %v424 = vpop.permute.xlu0 %423
      %vm425 = vcmask 1039360
      %v426 = vsel %vm425, %v420, %v422
      %v427 = vsel %vm425, %v422, %v424
      %v430 = vsel %vm344, %v426, 0.0
      %v431 = vsel %vm345, %v427, 0.0
      %v434 = vrot.slane %v430, 4
      %v435 = vrot.slane %v431, 4
      %438 = vst [vmem:[#allocation3 + $0x20] sm:$0xf0] %v434
      %439 = vst [vmem:[#allocation3 + $0x28] sm:$0xf0] %v435
      %v440 = vld [vmem:[#allocation2 + $0x4] sm:$0xff]
      %v441 = vld [vmem:[#allocation2 + $0xc] sm:$0xf]
      %444 = vst [vmem:[#allocation1] ss:$2 sm:$0xff] %v440
      %s445 = scalar_lea.vmem [#allocation1], 16
      %446 = vst [vmem:[%s445] ss:$2 sm:$0xff] %v441
      %v447 = vld.sshfl [vmem:[#allocation1] sm:$0xff pattern:$0x75316420]
      %v448 = vld.sshfl [vmem:[#allocation1 + $0x8] sm:$0xff pattern:$0x75316420]
      %v449 = vld.sshfl [vmem:[#allocation1 + $0x10] sm:$0xff pattern:$0x75316420]
      %450 = vrot.lane.b32.xlu0 %v447, 113
      %v451 = vpop.permute.xlu0 %450
      %452 = vrot.lane.b32.xlu0 %v448, 113
      %v453 = vpop.permute.xlu0 %452
      %454 = vrot.lane.b32.xlu0 %v449, 113
      %v455 = vpop.permute.xlu0 %454
      %vm456 = vcmask 924672
      %v457 = vsel %vm456, %v451, %v453
      %v458 = vsel %vm456, %v453, %v455
      %v461 = vsel %vm291, %v457, 0.0
      %v462 = vsel %vm292, %v458, 0.0
      %463 = vst [vmem:[#allocation3 + $0x30] sm:$0xf] %v461
      %464 = vst [vmem:[#allocation3 + $0x38] sm:$0xf] %v462
      %v465 = vld [vmem:[#allocation2 + $0x4] sm:$0xff]
      %v466 = vld [vmem:[#allocation2 + $0xc] sm:$0xf]
      %s469 = scalar_lea.vmem [#allocation1], 1
      %470 = vst [vmem:[%s469] ss:$2 sm:$0xff] %v465
      %s471 = scalar_lea.vmem [#allocation1], 17
      %472 = vst [vmem:[%s471] ss:$2 sm:$0xff] %v466
      %v473 = vld.sshfl [vmem:[#allocation1] sm:$0xff pattern:$0x75316420]
      %v474 = vld.sshfl [vmem:[#allocation1 + $0x8] sm:$0xff pattern:$0x75316420]
      %v475 = vld.sshfl [vmem:[#allocation1 + $0x10] sm:$0xff pattern:$0x75316420]
      %476 = vrot.lane.b32.xlu0 %v473, 112
      %v477 = vpop.permute.xlu0 %476
      %478 = vrot.lane.b32.xlu0 %v474, 112
      %v479 = vpop.permute.xlu0 %478
      %480 = vrot.lane.b32.xlu0 %v475, 112
      %v481 = vpop.permute.xlu0 %480
      %vm482 = vcmask 916480
      %v483 = vsel %vm482, %v477, %v479
      %v484 = vsel %vm482, %v479, %v481
      %487 = vst [vmem:[#allocation3 + $0x30] sm:$0xf0] %v483
      %488 = vst [vmem:[#allocation3 + $0x38] sm:$0xf0] %v484
      %v489 = vld [vmem:[#allocation2 + $0x4] sm:$0xff]
      %v490 = vld [vmem:[#allocation2 + $0xc] sm:$0xf]
      %493 = vst [vmem:[#allocation1] ss:$2 sm:$0xff] %v489
      %s494 = scalar_lea.vmem [#allocation1], 16
      %495 = vst [vmem:[%s494] ss:$2 sm:$0xff] %v490
      %v496 = vld.sshfl [vmem:[#allocation1] sm:$0xff pattern:$0x75316420]
      %v497 = vld.sshfl [vmem:[#allocation1 + $0x8] sm:$0xff pattern:$0x75316420]
      %v498 = vld.sshfl [vmem:[#allocation1 + $0x10] sm:$0xff pattern:$0x75316420]
      %499 = vrot.lane.b32.xlu0 %v496, 111
      %v500 = vpop.permute.xlu0 %499
      %501 = vrot.lane.b32.xlu0 %v497, 111
      %v502 = vpop.permute.xlu0 %501
      %503 = vrot.lane.b32.xlu0 %v498, 111
      %v504 = vpop.permute.xlu0 %503
      %vm505 = vcmask 908288
      %v506 = vsel %vm505, %v500, %v502
      %v507 = vsel %vm505, %v502, %v504
      %v510 = vsel %vm344, %v506, 0.0
      %v511 = vsel %vm345, %v507, 0.0
      %512 = vst [vmem:[#allocation3 + $0x40] sm:$0xf] %v510
      %513 = vst [vmem:[#allocation3 + $0x48] sm:$0xf] %v511
      %v514 = vld [vmem:[%s1] sm:$0xf]
      %v515 = vld [vmem:[#allocation3] sm:$0xff]
      %v516 = vld [vmem:[#allocation3 + $0x8] sm:$0xff]
      %v517 = vld [vmem:[#allocation3 + $0x10] sm:$0xff]
      %v518 = vld [vmem:[#allocation3 + $0x18] sm:$0xff]
      %v519 = vld [vmem:[#allocation3 + $0x20] sm:$0xff]
      %v520 = vld [vmem:[#allocation3 + $0x28] sm:$0xff]
      %v521 = vld [vmem:[#allocation3 + $0x30] sm:$0xff]
      %v522 = vld [vmem:[#allocation3 + $0x38] sm:$0xff]
      %v523 = vld [vmem:[#allocation3 + $0x40] sm:$0xf]
      %v524 = vld [vmem:[#allocation3 + $0x48] sm:$0xf]
      %v525 = vld [vmem:[%s2] sm:$0xf]
      %527 = vset.pattern.permute.xlu0 0
      %528 = vperm.xlu0 %527, %v525
      %v529 = vpop.permute.xlu0 %528
      %vm531 = vcmask 293888
      %v533 = vsel %vm531, %v514, 0
      %vm535 = vcmask 1043456
      %v537 = vsel %vm535, %v523, 0
      %v540 = vsel %vm535, %v524, 0
      %542 = vmatpush.msra.mxu0 0.0
      %543 = vmatpush.msra.mxu0 0.0
      %544 = vmatpush.msra.mxu0 0.0
      %545 = vmatpush.msra.mxu0 0.0
      %546 = vmatpush.msra.mxu0 0.0
      %547 = vmatpush.msra.mxu0 0.0
      %548 = vmatpush.msra.mxu0 0.0
      %549 = vmatpush.msra.mxu0 0.0
      %550 = vmatpush.msra.mxu0 0.0
      %551 = vmatpush.msra.mxu0 0.0
      %552 = vmatpush.msra.mxu0 0.0
      %553 = vmatpush.msra.mxu0 %v537
      %554 = vmatpush.msra.mxu0 %v521
      %555 = vmatpush.msra.mxu0 %v519
      %556 = vmatpush.msra.mxu0 %v517
      %557 = vmatpush.msra.mxu0 %v515
      %558 = vmatmul.f32.gmra.mxu0 %v533
      %v559 = vpop.f32.mrf.mxu0
      %v560 = vadd.f32 %v529, %v559
      %561 = vdwg.mxu0
      %562 = vmatpush.msra.mxu0 0.0
      %563 = vmatpush.msra.mxu0 0.0
      %564 = vmatpush.msra.mxu0 0.0
      %565 = vmatpush.msra.mxu0 0.0
      %566 = vmatpush.msra.mxu0 0.0
      %567 = vmatpush.msra.mxu0 0.0
      %568 = vmatpush.msra.mxu0 0.0
      %569 = vmatpush.msra.mxu0 0.0
      %570 = vmatpush.msra.mxu0 0.0
      %571 = vmatpush.msra.mxu0 0.0
      %572 = vmatpush.msra.mxu0 0.0
      %573 = vmatpush.msra.mxu0 %v540
      %574 = vmatpush.msra.mxu0 %v522
      %575 = vmatpush.msra.mxu0 %v520
      %576 = vmatpush.msra.mxu0 %v518
      %577 = vmatpush.msra.mxu0 %v516
      %578 = vmatmul.f32.gmra.mxu0 %v533
      %v579 = vpop.f32.mrf.mxu0
      %v580 = vadd.f32 %v529, %v579
      %581 = vdwg.mxu0
      %v582 = vmax.f32 %v560, 0.0
      %v583 = vmax.f32 %v580, 0.0
      %v586 = vrot.slane %v583, 4
      %v587 = vsel %vm535, %v582, %v586
      %589 = vst [vmem:[#allocation2 + $0x4] sm:$0xff] %v587
      %v590 = vld [vmem:[#allocation2] sm:$0xff]
      %v591 = vld [vmem:[#allocation2 + $0x8] sm:$0xf]
      %594 = vst [vmem:[#allocation1] ss:$2 sm:$0xff] %v590
      %s595 = scalar_lea.vmem [#allocation1], 16
      %596 = vst [vmem:[%s595] ss:$2 sm:$0xff] %v591
      %v597 = vld.sshfl [vmem:[#allocation1] sm:$0xff pattern:$0x75316420]
      %v598 = vld.sshfl [vmem:[#allocation1 + $0x8] sm:$0xff pattern:$0x75316420]
      %v599 = vld.sshfl [vmem:[#allocation1 + $0x10] sm:$0xff pattern:$0x75316420]
      %600 = vrot.lane.b32.xlu0 %v597, 17
      %v601 = vpop.permute.xlu0 %600
      %602 = vrot.lane.b32.xlu0 %v598, 17
      %v603 = vpop.permute.xlu0 %602
      %604 = vrot.lane.b32.xlu0 %v599, 17
      %v605 = vpop.permute.xlu0 %604
      %v606 = vsel %vm307, %v601, %v603
      %v607 = vsel %vm307, %v603, %v605
      %v610 = vsel %vm291, %v606, 0.0
      %v611 = vsel %vm292, %v607, 0.0
      %612 = vst [vmem:[#allocation3] sm:$0xf] %v610
      %613 = vst [vmem:[#allocation3 + $0x8] sm:$0xf] %v611
      %v614 = vld [vmem:[#allocation2] sm:$0xff]
      %v615 = vld [vmem:[#allocation2 + $0x8] sm:$0xf]
      %s618 = scalar_lea.vmem [#allocation1], 1
      %619 = vst [vmem:[%s618] ss:$2 sm:$0xff] %v614
      %s620 = scalar_lea.vmem [#allocation1], 17
      %621 = vst [vmem:[%s620] ss:$2 sm:$0xff] %v615
      %v622 = vld.sshfl [vmem:[#allocation1] sm:$0xff pattern:$0x75316420]
      %v623 = vld.sshfl [vmem:[#allocation1 + $0x8] sm:$0xff pattern:$0x75316420]
      %v624 = vld.sshfl [vmem:[#allocation1 + $0x10] sm:$0xff pattern:$0x75316420]
      %625 = vrot.lane.b32.xlu0 %v622, 16
      %v626 = vpop.permute.xlu0 %625
      %627 = vrot.lane.b32.xlu0 %v623, 16
      %v628 = vpop.permute.xlu0 %627
      %629 = vrot.lane.b32.xlu0 %v624, 16
      %v630 = vpop.permute.xlu0 %629
      %v631 = vsel %vm333, %v626, %v628
      %v632 = vsel %vm333, %v628, %v630
      %635 = vst [vmem:[#allocation3] sm:$0xf0] %v631
      %636 = vst [vmem:[#allocation3 + $0x8] sm:$0xf0] %v632
      %v637 = vld [vmem:[#allocation2] sm:$0xff]
      %v638 = vld [vmem:[#allocation2 + $0x8] sm:$0xf]
      %641 = vst [vmem:[#allocation1] ss:$2 sm:$0xff] %v637
      %s642 = scalar_lea.vmem [#allocation1], 16
      %643 = vst [vmem:[%s642] ss:$2 sm:$0xff] %v638
      %v644 = vld.sshfl [vmem:[#allocation1] sm:$0xff pattern:$0x75316420]
      %v645 = vld.sshfl [vmem:[#allocation1 + $0x8] sm:$0xff pattern:$0x75316420]
      %v646 = vld.sshfl [vmem:[#allocation1 + $0x10] sm:$0xff pattern:$0x75316420]
      %647 = vrot.lane.b32.xlu0 %v644, 15
      %v648 = vpop.permute.xlu0 %647
      %649 = vrot.lane.b32.xlu0 %v645, 15
      %v650 = vpop.permute.xlu0 %649
      %651 = vrot.lane.b32.xlu0 %v646, 15
      %v652 = vpop.permute.xlu0 %651
      %v653 = vsel %vm360, %v648, %v650
      %v654 = vsel %vm360, %v650, %v652
      %v657 = vsel %vm344, %v653, 0.0
      %v658 = vsel %vm345, %v654, 0.0
      %659 = vst [vmem:[#allocation3 + $0x10] sm:$0xf] %v657
      %660 = vst [vmem:[#allocation3 + $0x18] sm:$0xf] %v658
      %v661 = vld [vmem:[#allocation2] sm:$0xff]
      %v662 = vld [vmem:[#allocation2 + $0x8] sm:$0xf]
      %665 = vst [vmem:[#allocation1] ss:$2 sm:$0xff] %v661
      %s666 = scalar_lea.vmem [#allocation1], 16
      %667 = vst [vmem:[%s666] ss:$2 sm:$0xff] %v662
      %v668 = vld.sshfl [vmem:[#allocation1] sm:$0xff pattern:$0x75316420]
      %v669 = vld.sshfl [vmem:[#allocation1 + $0x8] sm:$0xff pattern:$0x75316420]
      %v670 = vld.sshfl [vmem:[#allocation1 + $0x10] sm:$0xff pattern:$0x75316420]
      %671 = vrot.lane.b32.xlu0 %v668, 1
      %v672 = vpop.permute.xlu0 %671
      %673 = vrot.lane.b32.xlu0 %v669, 1
      %v674 = vpop.permute.xlu0 %673
      %675 = vrot.lane.b32.xlu0 %v670, 1
      %v676 = vpop.permute.xlu0 %675
      %v677 = vsel %vm385, %v672, %v674
      %v678 = vsel %vm385, %v674, %v676
      %v681 = vsel %vm291, %v677, 0.0
      %v682 = vsel %vm292, %v678, 0.0
      %v685 = vrot.slane %v681, 4
      %v686 = vrot.slane %v682, 4
      %689 = vst [vmem:[#allocation3 + $0x10] sm:$0xf0] %v685
      %690 = vst [vmem:[#allocation3 + $0x18] sm:$0xf0] %v686
      %v691 = vld [vmem:[#allocation2 + $0x4] sm:$0xff]
      %693 = vst [vmem:[#allocation1] ss:$2 sm:$0xff] %v691
      %v694 = vld.sshfl [vmem:[#allocation1] sm:$0xff pattern:$0x75316420]
      %v695 = vld.sshfl [vmem:[#allocation1 + $0x8] sm:$0xff pattern:$0x75316420]
      %698 = vst [vmem:[#allocation3 + $0x20] sm:$0xf] %v694
      %699 = vst [vmem:[#allocation3 + $0x28] sm:$0xf] %v695
      %v700 = vld [vmem:[#allocation2 + $0x4] sm:$0xff]
      %v701 = vld [vmem:[#allocation2 + $0xc] sm:$0xf]
      %704 = vst [vmem:[#allocation1] ss:$2 sm:$0xff] %v700
      %s705 = scalar_lea.vmem [#allocation1], 16
      %706 = vst [vmem:[%s705] ss:$2 sm:$0xff] %v701
      %v707 = vld.sshfl [vmem:[#allocation1] sm:$0xff pattern:$0x75316420]
      %v708 = vld.sshfl [vmem:[#allocation1 + $0x8] sm:$0xff pattern:$0x75316420]
      %v709 = vld.sshfl [vmem:[#allocation1 + $0x10] sm:$0xff pattern:$0x75316420]
      %710 = vrot.lane.b32.xlu0 %v707, 127
      %v711 = vpop.permute.xlu0 %710
      %712 = vrot.lane.b32.xlu0 %v708, 127
      %v713 = vpop.permute.xlu0 %712
      %714 = vrot.lane.b32.xlu0 %v709, 127
      %v715 = vpop.permute.xlu0 %714
      %v716 = vsel %vm425, %v711, %v713
      %v717 = vsel %vm425, %v713, %v715
      %v720 = vsel %vm344, %v716, 0.0
      %v721 = vsel %vm345, %v717, 0.0
      %v724 = vrot.slane %v720, 4
      %v725 = vrot.slane %v721, 4
      %728 = vst [vmem:[#allocation3 + $0x20] sm:$0xf0] %v724
      %729 = vst [vmem:[#allocation3 + $0x28] sm:$0xf0] %v725
      %v730 = vld [vmem:[#allocation2 + $0x4] sm:$0xff]
      %v731 = vld [vmem:[#allocation2 + $0xc] sm:$0xf]
      %734 = vst [vmem:[#allocation1] ss:$2 sm:$0xff] %v730
      %s735 = scalar_lea.vmem [#allocation1], 16
      %736 = vst [vmem:[%s735] ss:$2 sm:$0xff] %v731
      %v737 = vld.sshfl [vmem:[#allocation1] sm:$0xff pattern:$0x75316420]
      %v738 = vld.sshfl [vmem:[#allocation1 + $0x8] sm:$0xff pattern:$0x75316420]
      %v739 = vld.sshfl [vmem:[#allocation1 + $0x10] sm:$0xff pattern:$0x75316420]
      %740 = vrot.lane.b32.xlu0 %v737, 113
      %v741 = vpop.permute.xlu0 %740
      %742 = vrot.lane.b32.xlu0 %v738, 113
      %v743 = vpop.permute.xlu0 %742
      %744 = vrot.lane.b32.xlu0 %v739, 113
      %v745 = vpop.permute.xlu0 %744
      %v746 = vsel %vm456, %v741, %v743
      %v747 = vsel %vm456, %v743, %v745
      %v750 = vsel %vm291, %v746, 0.0
      %v751 = vsel %vm292, %v747, 0.0
      %752 = vst [vmem:[#allocation3 + $0x30] sm:$0xf] %v750
      %753 = vst [vmem:[#allocation3 + $0x38] sm:$0xf] %v751
      %v754 = vld [vmem:[#allocation2 + $0x4] sm:$0xff]
      %v755 = vld [vmem:[#allocation2 + $0xc] sm:$0xf]
      %s758 = scalar_lea.vmem [#allocation1], 1
      %759 = vst [vmem:[%s758] ss:$2 sm:$0xff] %v754
      %s760 = scalar_lea.vmem [#allocation1], 17
      %761 = vst [vmem:[%s760] ss:$2 sm:$0xff] %v755
      %v762 = vld.sshfl [vmem:[#allocation1] sm:$0xff pattern:$0x75316420]
      %v763 = vld.sshfl [vmem:[#allocation1 + $0x8] sm:$0xff pattern:$0x75316420]
      %v764 = vld.sshfl [vmem:[#allocation1 + $0x10] sm:$0xff pattern:$0x75316420]
      %765 = vrot.lane.b32.xlu0 %v762, 112
      %v766 = vpop.permute.xlu0 %765
      %767 = vrot.lane.b32.xlu0 %v763, 112
      %v768 = vpop.permute.xlu0 %767
      %769 = vrot.lane.b32.xlu0 %v764, 112
      %v770 = vpop.permute.xlu0 %769
      %v771 = vsel %vm482, %v766, %v768
      %v772 = vsel %vm482, %v768, %v770
      %775 = vst [vmem:[#allocation3 + $0x30] sm:$0xf0] %v771
      %776 = vst [vmem:[#allocation3 + $0x38] sm:$0xf0] %v772
      %v777 = vld [vmem:[#allocation2 + $0x4] sm:$0xff]
      %v778 = vld [vmem:[#allocation2 + $0xc] sm:$0xf]
      %781 = vst [vmem:[#allocation1] ss:$2 sm:$0xff] %v777
      %s782 = scalar_lea.vmem [#allocation1], 16
      %783 = vst [vmem:[%s782] ss:$2 sm:$0xff] %v778
      %v784 = vld.sshfl [vmem:[#allocation1] sm:$0xff pattern:$0x75316420]
      %v785 = vld.sshfl [vmem:[#allocation1 + $0x8] sm:$0xff pattern:$0x75316420]
      %v786 = vld.sshfl [vmem:[#allocation1 + $0x10] sm:$0xff pattern:$0x75316420]
      %787 = vrot.lane.b32.xlu0 %v784, 111
      %v788 = vpop.permute.xlu0 %787
      %789 = vrot.lane.b32.xlu0 %v785, 111
      %v790 = vpop.permute.xlu0 %789
      %791 = vrot.lane.b32.xlu0 %v786, 111
      %v792 = vpop.permute.xlu0 %791
      %v793 = vsel %vm505, %v788, %v790
      %v794 = vsel %vm505, %v790, %v792
      %v797 = vsel %vm344, %v793, 0.0
      %v798 = vsel %vm345, %v794, 0.0
      %799 = vst [vmem:[#allocation3 + $0x40] sm:$0xf] %v797
      %800 = vst [vmem:[#allocation3 + $0x48] sm:$0xf] %v798
      %v801 = vld [vmem:[%s3] sm:$0xf]
      %v802 = vld [vmem:[#allocation3] sm:$0xff]
      %v803 = vld [vmem:[#allocation3 + $0x8] sm:$0xff]
      %v804 = vld [vmem:[#allocation3 + $0x10] sm:$0xff]
      %v805 = vld [vmem:[#allocation3 + $0x18] sm:$0xff]
      %v806 = vld [vmem:[#allocation3 + $0x20] sm:$0xff]
      %v807 = vld [vmem:[#allocation3 + $0x28] sm:$0xff]
      %v808 = vld [vmem:[#allocation3 + $0x30] sm:$0xff]
      %v809 = vld [vmem:[#allocation3 + $0x38] sm:$0xff]
      %v810 = vld [vmem:[#allocation3 + $0x40] sm:$0xf]
      %v811 = vld [vmem:[#allocation3 + $0x48] sm:$0xf]
      %813 = vst [vmem:[#allocation1] ss:$2 sm:$0xff] %v285
      %v814 = vld.sshfl [vmem:[#allocation1] sm:$0xff pattern:$0x75316420]
      %v815 = vld.sshfl [vmem:[#allocation1 + $0x8] sm:$0xff pattern:$0x75316420]
      %v819 = vsel %vm531, %v801, 0
      %v822 = vsel %vm535, %v810, 0
      %v825 = vsel %vm535, %v811, 0
      %827 = vmatpush.msra.mxu0 0.0
      %828 = vmatpush.msra.mxu0 0.0
      %829 = vmatpush.msra.mxu0 0.0
      %830 = vmatpush.msra.mxu0 0.0
      %831 = vmatpush.msra.mxu0 0.0
      %832 = vmatpush.msra.mxu0 0.0
      %833 = vmatpush.msra.mxu0 0.0
      %834 = vmatpush.msra.mxu0 0.0
      %835 = vmatpush.msra.mxu0 0.0
      %836 = vmatpush.msra.mxu0 0.0
      %837 = vmatpush.msra.mxu0 0.0
      %838 = vmatpush.msra.mxu0 %v822
      %839 = vmatpush.msra.mxu0 %v808
      %840 = vmatpush.msra.mxu0 %v806
      %841 = vmatpush.msra.mxu0 %v804
      %842 = vmatpush.msra.mxu0 %v802
      %843 = vmatmul.f32.gmra.mxu0 %v819
      %v844 = vpop.f32.mrf.mxu0
      %v845 = vadd.f32 %v814, %v844
      %846 = vdwg.mxu0
      %847 = vmatpush.msra.mxu0 0.0
      %848 = vmatpush.msra.mxu0 0.0
      %849 = vmatpush.msra.mxu0 0.0
      %850 = vmatpush.msra.mxu0 0.0
      %851 = vmatpush.msra.mxu0 0.0
      %852 = vmatpush.msra.mxu0 0.0
      %853 = vmatpush.msra.mxu0 0.0
      %854 = vmatpush.msra.mxu0 0.0
      %855 = vmatpush.msra.mxu0 0.0
      %856 = vmatpush.msra.mxu0 0.0
      %857 = vmatpush.msra.mxu0 0.0
      %858 = vmatpush.msra.mxu0 %v825
      %859 = vmatpush.msra.mxu0 %v809
      %860 = vmatpush.msra.mxu0 %v807
      %861 = vmatpush.msra.mxu0 %v805
      %862 = vmatpush.msra.mxu0 %v803
      %863 = vmatmul.f32.gmra.mxu0 %v819
      %v864 = vpop.f32.mrf.mxu0
      %v865 = vadd.f32 %v815, %v864
      %866 = vdwg.mxu0
      %v867 = vld [vmem:[%s4] sm:$0xf]
      %869 = vset.pattern.permute.xlu0 0
      %870 = vperm.xlu0 %869, %v867
      %v871 = vpop.permute.xlu0 %870
      %v873 = vmul.f32 %v845, %v871
      %v874 = vmul.f32 %v865, %v871
      %v875 = vld [vmem:[%s5] sm:$0xf]
      %877 = vset.pattern.permute.xlu0 0
      %878 = vperm.xlu0 %877, %v875
      %v879 = vpop.permute.xlu0 %878
      %v881 = vadd.f32 %v873, %v879
      %v882 = vadd.f32 %v874, %v879
      %v883 = vmax.f32 %v881, 0.0
      %v884 = vmax.f32 %v882, 0.0
      %v887 = vrot.slane %v884, 4
      %v888 = vsel %vm535, %v883, %v887
      %890 = vst [vmem:[%s251] sm:$0xff] %v888
      %p891 = scmp.lt.s32.totalorder %s17, 1
      %s892 = scalar_select %p891, %s17, 1
      %s893 = smul.addr %s892, 2
      %s894 = smul.addr %s893, 4
      %s895 = scalar_lea.vmem %s6, %s894
      // Predicated region
      $region45: #{basic_block_forward.1} parent=43 // pred_check
        %p896 = pneg %p166
      $region46: #{basic_block_forward.1} parent=43 // pred_check_branch
        %898 = sbr.rel (%p896) target = $region48
      $region47: #{basic_block_forward.1} parent=43 // pred_region
        _
      $region48: #{basic_block_forward.1} parent=43 // pred_fallthru
        _
    $region44: #{basic_block_forward.1} parent=5 // pred_fallthru
      _
    %p899 = scmp.le.s32.totalorder 2, %s12
    // Predicated region
    $region49: #{basic_block_forward.1} parent=5 // pred_check
      %p900 = pneg %p899
    $region50: #{basic_block_forward.1} parent=5 // pred_check_branch
      %902 = sbr.rel (%p900) target = $region52
    $region51: #{basic_block_forward.1} parent=5 // pred_region
      %s903 = ssub.s32 %s12, 2
      // Predicated region
      $region53: #{basic_block_forward.1} parent=51 // pred_check
        %p904 = pneg %p172
      $region54: #{basic_block_forward.1} parent=51 // pred_check_branch
        %906 = sbr.rel (%p904) target = $region56
      $region55: #{basic_block_forward.1} parent=51 // pred_region
        %p907 = scmp.lt.s32.totalorder %s18, 1
        %s908 = scalar_select %p907, %s18, 1
        %s909 = smul.addr %s908, 2
        %s910 = smul.addr %s909, 4
        %s911 = scalar_lea.vmem %s6, %s910
      $region56: #{basic_block_forward.1} parent=51 // pred_fallthru
        _
    $region52: #{basic_block_forward.1} parent=5 // pred_fallthru
      _
  $region6: #{basic_block_forward.1} parent=0 // loop_footer
    %s16 = sadd.s32 1, %s12
  $region7: #{basic_block_forward.1} parent=0 // loop_footer_branch
    %11 = sbr.rel target = $region3
  $region8: #{basic_block_forward.1} parent=0 // loop_exit
    _

</llo_original>
